<compile_context>
chip_gen: v7x
topology: tpu7x:2x2x1
jax: 0.10.0
libtpu: 0.0.40
codegen_flags: <defaults>
</compile_context>

<pallas_src>
import math

import jax
import jax.numpy as jnp
from jax.experimental import pallas as pl
from jax.experimental.pallas import tpu as pltpu

N1 = 512  # width of the first Linear (fixed by the module)


def _round_up(x, m):
    return ((x + m - 1) // m) * m


def _cdiv(a, b):
    return -(-a // b)


def _make_plan(d_in, hidden_size):
    """Tiling plan that depends only on the model dims (not the batch)."""
    try:
        phys_vmem = int(pltpu.get_tpu_info().vmem_capacity_bytes)
    except Exception:  # pragma: no cover - conservative fallback (v7x per-TC)
        phys_vmem = 64 << 20
    big_vmem = phys_vmem >= (96 << 20)          # v5e / v6e: 128 MiB
    max_tk = 4096 if big_vmem else 2048         # v7x: 64 MiB physical
    vmem_cap = (96 << 20) if big_vmem else (40 << 20)

    # Balanced K tiles: multiple of 128, <128 padding waste per tile.
    nk = max(1, _cdiv(_round_up(d_in, 128), max_tk))
    tk = _round_up(_cdiv(d_in, nk), 128)
    d_in_p = nk * tk

    # Lane-dense output: pad N up to a multiple of 128.
    Np = _round_up(hidden_size, 128)
    return dict(d_in=d_in, d_in_p=d_in_p, tk=tk, nk=nk, Np=Np,
                vmem_cap=vmem_cap)


def prepare_bottle_params(w1, b1, w2, b2, seq_len, hidden_size):
    """One-time weight prep (hoisted out of the per-call path):
    cast weights to bf16 and zero-pad to the kernel's tiled layout."""
    d_in = seq_len * hidden_size
    plan = _make_plan(d_in, hidden_size)
    d_in_p, Np = plan["d_in_p"], plan["Np"]

    w1_p = jnp.zeros((d_in_p, N1), jnp.bfloat16).at[:d_in, :].set(
        w1.astype(jnp.bfloat16))
    w2_p = jnp.zeros((N1, Np), jnp.bfloat16).at[:, :hidden_size].set(
        w2.astype(jnp.bfloat16))
    b1_p = b1.reshape(1, N1).astype(jnp.float32)
    b2_p = jnp.zeros((1, Np), jnp.float32).at[0, :hidden_size].set(
        b2.astype(jnp.float32))
    return w1_p, b1_p, w2_p, b2_p


def _bottle_kernel(x_ref, w1_ref, b1_ref, w2_ref, b2_ref, o_ref, acc_ref):
    # x_ref : (tm, tk)   f32    streamed tile of the flattened input
    # w1_ref: (tk, 512)  bf16   streamed tile of the first weight
    # b1_ref: (1, 512)   f32    resident
    # w2_ref: (512, Np)  bf16   resident
    # b2_ref: (1, Np)    f32    resident
    # o_ref : (tm, Np)   f32    resident across the K axis
    # acc_ref:(tm, 512)  f32    accumulator scratch
    k = pl.program_id(1)

    @pl.when(k == 0)
    def _():
        # Fold the first bias into the accumulator initialization.
        acc_ref[...] = jnp.broadcast_to(b1_ref[...], acc_ref.shape)

    # Streamed K-reduction of the first Linear on the MXU.
    # x is cast to bf16 in-kernel (VPU), avoiding a separate HBM cast pass.
    acc_ref[...] += jnp.dot(
        x_ref[...].astype(jnp.bfloat16), w1_ref[...],
        preferred_element_type=jnp.float32,
    )

    @pl.when(k == pl.num_programs(1) - 1)
    def _():
        h = acc_ref[...]
        # LeakyReLU (PyTorch default negative_slope = 0.01), kept in f32.
        h = jnp.where(h >= 0, h, 0.01 * h)
        out = jnp.dot(
            h.astype(w2_ref.dtype), w2_ref[...],
            preferred_element_type=jnp.float32,
        ) + b2_ref[...]
        o_ref[...] = out.astype(o_ref.dtype)


def bottle_forward(inp, w1_p, b1_p, w2_p, b2_p, seq_len, hidden_size):
    """inp: (B, seq_len, hidden_size) f32 -> (B, hidden_size) f32.

    Weights must come from prepare_bottle_params (bf16, padded)."""
    B = inp.shape[0]
    d_in = seq_len * hidden_size
    plan = _make_plan(d_in, hidden_size)
    tk, nk, d_in_p, Np = plan["tk"], plan["nk"], plan["d_in_p"], plan["Np"]

    # ---- batch tiling: balanced M tiles, up to 512 rows ----------------------
    if B >= 128:
        nm = _cdiv(B, 512)
        tm = _round_up(_cdiv(B, nm), 128)   # multiple of 128, <=512
    else:
        nm = 1
        tm = _round_up(max(B, 1), 8)        # f32 sublane packing
    Bp = nm * tm

    # ---- activation prep: no materialized copy when already aligned ----------
    x = inp.reshape(B, d_in).astype(jnp.float32)
    if (Bp != B) or (d_in_p != d_in):
        x_in = jnp.zeros((Bp, d_in_p), jnp.float32).at[:B, :d_in].set(x)
    else:
        x_in = x

    grid = (nm, nk)

    # VMEM estimate: double-buffered streams + resident f32 accumulator.
    vmem_est = (2 * tm * tk * 4          # x (f32, streamed)
                + 2 * tk * N1 * 2        # w1 (bf16, streamed)
                + 2 * N1 * 4             # b1
                + 2 * N1 * Np * 2        # w2
                + 2 * Np * 4             # b2
                + 2 * tm * Np * 4        # out
                + tm * N1 * 4)           # acc scratch
    vmem_limit = int(min(max(int(vmem_est * 1.5), 16 << 20), plan["vmem_cap"]))

    out_p = pl.pallas_call(
        _bottle_kernel,
        out_shape=jax.ShapeDtypeStruct((Bp, Np), jnp.float32),
        grid_spec=pltpu.PrefetchScalarGridSpec(
            num_scalar_prefetch=0,
            grid=grid,
            in_specs=[
                pl.BlockSpec((tm, tk), lambda i, k: (i, k)),   # x  (streamed)
                pl.BlockSpec((tk, N1), lambda i, k: (k, 0)),   # w1 (streamed)
                pl.BlockSpec((1, N1), lambda i, k: (0, 0)),    # b1 (resident)
                pl.BlockSpec((N1, Np), lambda i, k: (0, 0)),   # w2 (resident)
                pl.BlockSpec((1, Np), lambda i, k: (0, 0)),    # b2 (resident)
            ],
            out_specs=pl.BlockSpec((tm, Np), lambda i, k: (i, 0)),
            scratch_shapes=[pltpu.VMEM((tm, N1), jnp.float32)],
        ),
        compiler_params=pltpu.CompilerParams(
            dimension_semantics=("parallel", "arbitrary"),
            vmem_limit_bytes=vmem_limit,
        ),
    )(x_in, w1_p, b1_p, w2_p, b2_p)

    return out_p[:B, :hidden_size]


def init_params(key, seq_len, hidden_size):
    """Deterministic init mimicking nn.Linear's U(-1/sqrt(fan_in), 1/sqrt(fan_in))."""
    d_in = seq_len * hidden_size
    k1, k2, k3, k4 = jax.random.split(key, 4)
    lim1 = 1.0 / math.sqrt(d_in)
    lim2 = 1.0 / math.sqrt(N1)
    w1 = jax.random.uniform(k1, (d_in, N1), jnp.float32, -lim1, lim1)
    b1 = jax.random.uniform(k2, (N1,), jnp.float32, -lim1, lim1)
    w2 = jax.random.uniform(k3, (N1, hidden_size), jnp.float32, -lim2, lim2)
    b2 = jax.random.uniform(k4, (hidden_size,), jnp.float32, -lim2, lim2)
    return w1, b1, w2, b2


if __name__ == "__main__":
    seq_len = 8
    hidden_size = 32
    batch = 2

    key = jax.random.PRNGKey(0)
    kx, kp = jax.random.split(key)
    inp = jax.random.normal(kx, (batch, seq_len, hidden_size), jnp.float32)
    w1, b1, w2, b2 = init_params(kp, seq_len, hidden_size)

    # One-time weight prep (hoisted out of the per-call path).
    w1_p, b1_p, w2_p, b2_p = prepare_bottle_params(
        w1, b1, w2, b2, seq_len, hidden_size)

    out = bottle_forward(inp, w1_p, b1_p, w2_p, b2_p, seq_len, hidden_size)
    out = jax.block_until_ready(out)
    assert out.shape == (batch, hidden_size)

    # Reference matching the kernel's bf16 weight/activation quantization.
    x = inp.reshape(batch, seq_len * hidden_size)
    xq = x.astype(jnp.bfloat16).astype(jnp.float32)
    w1q = w1.astype(jnp.bfloat16).astype(jnp.float32)
    w2q = w2.astype(jnp.bfloat16).astype(jnp.float32)
    h = xq @ w1q + b1
    h = jnp.where(h >= 0, h, 0.01 * h)
    ref_bf16 = h.astype(jnp.bfloat16).astype(jnp.float32) @ w2q + b2
    assert jnp.allclose(out, ref_bf16, atol=2e-3, rtol=2e-3)

    # Loose sanity check against the full-f32 PyTorch-equivalent math.
    h32 = x @ w1 + b1
    h32 = jnp.where(h32 >= 0, h32, 0.01 * h32)
    ref_f32 = h32 @ w2 + b2
    assert jnp.allclose(out, ref_f32, atol=5e-2, rtol=5e-2)

    print("KERNEL_OK")
</pallas_src>

<mosaic_0001>
module attributes {stable_mosaic.version = 11 : i64} {
  func.func @_bottle_kernel(%arg0: i32, %arg1: i32, %arg2: memref<8x256xf32, #tpu.memory_space<vmem>>, %arg3: memref<256x512xbf16, #tpu.memory_space<vmem>>, %arg4: memref<1x512xf32, #tpu.memory_space<vmem>>, %arg5: memref<512x128xbf16, #tpu.memory_space<vmem>>, %arg6: memref<1x128xf32, #tpu.memory_space<vmem>>, %arg7: memref<8x128xf32, #tpu.memory_space<vmem>>, %arg8: memref<8x512xf32, #tpu.memory_space<vmem>>) attributes {dimension_semantics = [#tpu.dimension_semantics<parallel>, #tpu.dimension_semantics<arbitrary>], iteration_bounds = array<i64: 1, 1>, scalar_prefetch = 0 : i64, scratch_operands = 1 : i64, tpu.core_type = #tpu.core_type<tc>, window_params = [{transform_indices = @transform_0, window_bounds = array<i64: 8, 256>}, {transform_indices = @transform_1, window_bounds = array<i64: 256, 512>}, {pipeline_mode = #tpu.pipeline_mode<synchronous>, transform_indices = @transform_2, window_bounds = array<i64: 1, 512>}, {pipeline_mode = #tpu.pipeline_mode<synchronous>, transform_indices = @transform_3, window_bounds = array<i64: 512, 128>}, {pipeline_mode = #tpu.pipeline_mode<synchronous>, transform_indices = @transform_4, window_bounds = array<i64: 1, 128>}, {transform_indices = @transform_5, window_bounds = array<i64: 8, 128>}]} {
    %c0_i32 = arith.constant 0 : i32
    %0 = arith.cmpi eq, %arg1, %c0_i32 : i32
    %1 = arith.extui %0 : i1 to i32
    %c0_i32_0 = arith.constant 0 : i32
    %2 = arith.cmpi ne, %1, %c0_i32_0 : i32
    scf.if %2 {
      %c0_10 = arith.constant 0 : index
      %c0_11 = arith.constant 0 : index
      %13 = vector.load %arg4[%c0_10, %c0_11] : memref<1x512xf32, #tpu.memory_space<vmem>>, vector<1x512xf32>
      %14 = vector.shape_cast %13 : vector<1x512xf32> to vector<1x512xf32>
      %15 = vector.broadcast %14 : vector<1x512xf32> to vector<8x512xf32>
      %c0_12 = arith.constant 0 : index
      %c0_13 = arith.constant 0 : index
      %16 = vector.load %arg8[%c0_12, %c0_13] : memref<8x512xf32, #tpu.memory_space<vmem>>, vector<8x512xf32>
      tpu.vector_store %arg8[%c0_12, %c0_13], %15 {strides = array<i32>} : memref<8x512xf32, #tpu.memory_space<vmem>>, vector<8x512xf32>,
    } else {
    }
    %c0 = arith.constant 0 : index
    %c0_1 = arith.constant 0 : index
    %3 = vector.load %arg8[%c0, %c0_1] : memref<8x512xf32, #tpu.memory_space<vmem>>, vector<8x512xf32>
    %c0_2 = arith.constant 0 : index
    %c0_3 = arith.constant 0 : index
    %4 = vector.load %arg2[%c0_2, %c0_3] : memref<8x256xf32, #tpu.memory_space<vmem>>, vector<8x256xf32>
    %5 = arith.truncf %4 : vector<8x256xf32> to vector<8x256xbf16>
    %c0_4 = arith.constant 0 : index
    %c0_5 = arith.constant 0 : index
    %6 = vector.load %arg3[%c0_4, %c0_5] : memref<256x512xbf16, #tpu.memory_space<vmem>>, vector<256x512xbf16>
    %cst = arith.constant dense<0.000000e+00> : vector<8x512xf32>
    %7 = tpu.matmul %5, %6, %cst {dimension_numbers = #tpu.dot_dimension_numbers<[1], [0], [0], [1], [0, 0, 1, 1], [], []>} : vector<8x256xbf16>, vector<256x512xbf16>, vector<8x512xf32> -> vector<8x512xf32>
    %8 = arith.addf %3, %7 : vector<8x512xf32>
    %c0_6 = arith.constant 0 : index
    %c0_7 = arith.constant 0 : index
    %9 = vector.load %arg8[%c0_6, %c0_7] : memref<8x512xf32, #tpu.memory_space<vmem>>, vector<8x512xf32>
    tpu.vector_store %arg8[%c0_6, %c0_7], %8 {strides = array<i32>} : memref<8x512xf32, #tpu.memory_space<vmem>>, vector<8x512xf32>,
    %c0_i32_8 = arith.constant 0 : i32
    %10 = arith.cmpi eq, %arg1, %c0_i32_8 : i32
    %11 = arith.extui %10 : i1 to i32
    %c0_i32_9 = arith.constant 0 : i32
    %12 = arith.cmpi ne, %11, %c0_i32_9 : i32
    scf.if %12 {
      %c0_10 = arith.constant 0 : index
      %c0_11 = arith.constant 0 : index
      %13 = vector.load %arg8[%c0_10, %c0_11] : memref<8x512xf32, #tpu.memory_space<vmem>>, vector<8x512xf32>
      %cst_12 = arith.constant 0.000000e+00 : f32
      %14 = vector.broadcast %cst_12 : f32 to vector<8x512xf32>
      %15 = arith.cmpf oge, %13, %14 : vector<8x512xf32>
      %cst_13 = arith.constant 0.00999999977 : f32
      %16 = vector.broadcast %cst_13 : f32 to vector<8x512xf32>
      %17 = arith.mulf %16, %13 : vector<8x512xf32>
      %18 = arith.select %15, %13, %17 : vector<8x512xi1>, vector<8x512xf32>
      %19 = arith.truncf %18 : vector<8x512xf32> to vector<8x512xbf16>
      %c0_14 = arith.constant 0 : index
      %c0_15 = arith.constant 0 : index
      %20 = vector.load %arg5[%c0_14, %c0_15] : memref<512x128xbf16, #tpu.memory_space<vmem>>, vector<512x128xbf16>
      %cst_16 = arith.constant dense<0.000000e+00> : vector<8x128xf32>
      %21 = tpu.matmul %19, %20, %cst_16 {dimension_numbers = #tpu.dot_dimension_numbers<[1], [0], [0], [1], [0, 0, 1, 1], [], []>} : vector<8x512xbf16>, vector<512x128xbf16>, vector<8x128xf32> -> vector<8x128xf32>
      %c0_17 = arith.constant 0 : index
      %c0_18 = arith.constant 0 : index
      %22 = vector.load %arg6[%c0_17, %c0_18] : memref<1x128xf32, #tpu.memory_space<vmem>>, vector<1x128xf32>
      %23 = vector.broadcast %22 : vector<1x128xf32> to vector<8x128xf32>
      %24 = arith.addf %21, %23 : vector<8x128xf32>
      %c0_19 = arith.constant 0 : index
      %c0_20 = arith.constant 0 : index
      %25 = vector.load %arg7[%c0_19, %c0_20] : memref<8x128xf32, #tpu.memory_space<vmem>>, vector<8x128xf32>
      tpu.vector_store %arg7[%c0_19, %c0_20], %24 {strides = array<i32>} : memref<8x128xf32, #tpu.memory_space<vmem>>, vector<8x128xf32>,
    } else {
    }
    return
  }
  func.func @transform_0(%arg0: i32, %arg1: i32) -> (i32, i32) {
    %c0_i32 = arith.constant 0 : i32
    return %arg0, %arg1 : i32, i32
  }
  func.func @transform_1(%arg0: i32, %arg1: i32) -> (i32, i32) {
    %c0_i32 = arith.constant 0 : i32
    %c0_i32_0 = arith.constant 0 : i32
    return %arg1, %c0_i32 : i32, i32
  }
  func.func @transform_2(%arg0: i32, %arg1: i32) -> (i32, i32) {
    %c0_i32 = arith.constant 0 : i32
    %c0_i32_0 = arith.constant 0 : i32
    %c0_i32_1 = arith.constant 0 : i32
    return %c0_i32, %c0_i32_0 : i32, i32
  }
  func.func @transform_3(%arg0: i32, %arg1: i32) -> (i32, i32) {
    %c0_i32 = arith.constant 0 : i32
    %c0_i32_0 = arith.constant 0 : i32
    %c0_i32_1 = arith.constant 0 : i32
    return %c0_i32, %c0_i32_0 : i32, i32
  }
  func.func @transform_4(%arg0: i32, %arg1: i32) -> (i32, i32) {
    %c0_i32 = arith.constant 0 : i32
    %c0_i32_0 = arith.constant 0 : i32
    %c0_i32_1 = arith.constant 0 : i32
    return %c0_i32, %c0_i32_0 : i32, i32
  }
  func.func @transform_5(%arg0: i32, %arg1: i32) -> (i32, i32) {
    %c0_i32 = arith.constant 0 : i32
    %c0_i32_0 = arith.constant 0 : i32
    return %arg0, %c0_i32 : i32, i32
  }
}

</mosaic_0001>

<llo_original>
// kernel: tpu_custom_call.1
$region0: #{tpu_custom_call.1}
  #allocation0 [shape = 'u32[]', space=smem, size = 0x4, offset = 0x4, fixed_abs, tag = 'smem constant byte address 0x4 - core index']
  #allocation1 [shape = 'u32[144,128]{1,0:T(1,128)}', space=vmem, size = 0x12000, scoped, tag = 'internal scratch']
  #allocation2 [shape = 'f32[8,512]{1,0:T(8,128)}', space=vmem, size = 0x4000, scoped, tag = 'scratch operand']
  %s0 = inlined_call_operand.hbm [shape: f32[8,256], index: 0, kind: input, shape index: {}]
  %s1 = inlined_call_operand.hbm [shape: bf16[256,512], index: 1, kind: input, shape index: {}]
  %s2 = inlined_call_operand.vmem [shape: f32[1,512], index: 2, kind: input, shape index: {}]
  %s3 = inlined_call_operand.hbm [shape: bf16[512,128], index: 3, kind: input, shape index: {}]
  %s4 = inlined_call_operand.vmem [shape: f32[1,128], index: 4, kind: input, shape index: {}]
  %s5 = inlined_call_operand.hbm [shape: f32[8,128], index: 5, kind: output, shape index: {}]
  %s6 = sld [smem:[#allocation0]]
  $region50: #{tpu_custom_call.1} parent=0
    _
  %s8 = ssub.s32 1, %s6
  %s9 = scalar_select 0, %s8, %s6
  $region1: #{tpu_custom_call.1} parent=0
    #allocation3 [shape = 'u8[8192]{0}', space=vmem, size = 0x2000, scoped, tag = 'input window, operand 0, single buffered']
    #allocation4 [shape = 's32[1]{0}', space=sflag, size = 0x4, scoped, tag = 'scoped memory for tpu_custom_call.1']
    #allocation5 [shape = 's32[1]{0}', space=sflag, size = 0x4, scoped, tag = 'scoped memory for tpu_custom_call.1']
    #allocation6 [shape = 'u8[262144]{0}', space=vmem, size = 0x40000, scoped, tag = 'input window, operand 1, single buffered']
    #allocation7 [shape = 's32[1]{0}', space=sflag, size = 0x4, scoped, tag = 'scoped memory for tpu_custom_call.1']
    #allocation8 [shape = 'u8[131072]{0}', space=vmem, size = 0x20000, scoped, tag = 'input window, operand 3, single buffered']
    #allocation9 [shape = 'u8[4096]{0}', space=vmem, size = 0x1000, scoped, tag = 'output window, operand 0, single buffered']
    %10 = vsyncpa [#allocation4], 0
    %11 = vsyncpa [#allocation7], 0
    %12 = vsyncpa [#allocation5], 0
    // Predicated region
    $region2: #{tpu_custom_call.1} parent=1 // pred_check
      _
    $region3: #{tpu_custom_call.1} parent=1 // pred_check_branch
      %14 = sbr.rel (0) target = $region5
    $region4: #{tpu_custom_call.1} parent=1 // pred_region
      %s16 = ssub.s32 256, 256
      %17 = vsyncadd [#allocation4], %s16
      %s19 = sshll.u32 [#allocation3], 4
      %s20 = int_to_ptr.vmem [resolvable:$true] %s19
      %22 = dma.hbm_to_vmem [thread:$0]  %s0, 256, %s20, [#allocation4]
    $region5: #{tpu_custom_call.1} parent=1 // pred_fallthru
      _
    // Predicated region
    $region6: #{tpu_custom_call.1} parent=1 // pred_check
      _
    $region7: #{tpu_custom_call.1} parent=1 // pred_check_branch
      %24 = sbr.rel (0) target = $region9
    $region8: #{tpu_custom_call.1} parent=1 // pred_region
      %s26 = ssub.s32 8192, 8192
      %27 = vsyncadd [#allocation7], %s26
      %s28 = sshll.u32 [#allocation6], 4
      %s29 = int_to_ptr.vmem [resolvable:$true] %s28
      %34 = dma.hbm_to_vmem [thread:$0]  %s1, 8192, %s29, [#allocation7], 256, 256, 16
    $region9: #{tpu_custom_call.1} parent=1 // pred_fallthru
      _
    // Predicated region
    $region10: #{tpu_custom_call.1} parent=1 // pred_check
      _
    $region11: #{tpu_custom_call.1} parent=1 // pred_check_branch
      %36 = sbr.rel (0) target = $region13
    $region12: #{tpu_custom_call.1} parent=1 // pred_region
      _
    $region13: #{tpu_custom_call.1} parent=1 // pred_fallthru
      _
    // Predicated region
    $region14: #{tpu_custom_call.1} parent=1 // pred_check
      _
    $region15: #{tpu_custom_call.1} parent=1 // pred_check_branch
      %38 = sbr.rel (0) target = $region17
    $region16: #{tpu_custom_call.1} parent=1 // pred_region
      %s40 = ssub.s32 4096, 4096
      %41 = vsyncadd [#allocation7], %s40
      %s42 = sshll.u32 [#allocation8], 4
      %s43 = int_to_ptr.vmem [resolvable:$true] %s42
      %48 = dma.hbm_to_vmem [thread:$0]  %s3, 4096, %s43, [#allocation7], 64, 64, 4
    $region17: #{tpu_custom_call.1} parent=1 // pred_fallthru
      _
    // Predicated region
    $region18: #{tpu_custom_call.1} parent=1 // pred_check
      _
    $region19: #{tpu_custom_call.1} parent=1 // pred_check_branch
      %50 = sbr.rel (0) target = $region21
    $region20: #{tpu_custom_call.1} parent=1 // pred_region
      _
    $region21: #{tpu_custom_call.1} parent=1 // pred_fallthru
      _
    // Predicated region
    $region22: #{tpu_custom_call.1} parent=1 // pred_check
      _
    $region23: #{tpu_custom_call.1} parent=1 // pred_check_branch
      %52 = sbr.rel (0) target = $region25
    $region24: #{tpu_custom_call.1} parent=1 // pred_region
      %53 = dma.done [#allocation4], 256
    $region25: #{tpu_custom_call.1} parent=1 // pred_fallthru
      _
    // Predicated region
    $region26: #{tpu_custom_call.1} parent=1 // pred_check
      _
    $region27: #{tpu_custom_call.1} parent=1 // pred_check_branch
      %55 = sbr.rel (0) target = $region29
    $region28: #{tpu_custom_call.1} parent=1 // pred_region
      %56 = dma.done [#allocation7], 8192
    $region29: #{tpu_custom_call.1} parent=1 // pred_fallthru
      _
    // Predicated region
    $region30: #{tpu_custom_call.1} parent=1 // pred_check
      _
    $region31: #{tpu_custom_call.1} parent=1 // pred_check_branch
      %58 = sbr.rel (0) target = $region33
    $region32: #{tpu_custom_call.1} parent=1 // pred_region
      %59 = dma.done [#allocation7], 4096
    $region33: #{tpu_custom_call.1} parent=1 // pred_fallthru
      _
    %p61 = scmp.eq.s32.totalorder 0, 0
    // Predicated region
    $region34: #{tpu_custom_call.1} parent=1 // pred_check
      %p62 = pneg %p61
    $region35: #{tpu_custom_call.1} parent=1 // pred_check_branch
      %64 = sbr.rel (%p62) target = $region37
    $region36: #{tpu_custom_call.1} parent=1 // pred_region
      %v65 = vld [vmem:[%s2] sm:$0xf]
      %v67 = vlaneseq
      %v68 = vshrl.u32 %v67, 7
      %v69 = vsub.s32 0, %v68
      %v70 = vrot.slane %v65, %v69
      %v71 = vlaneseq
      %v72 = vshrl.u32 %v71, 7
      %v73 = vsub.s32 1, %v72
      %v74 = vrot.slane %v65, %v73
      %v75 = vlaneseq
      %v76 = vshrl.u32 %v75, 7
      %v77 = vsub.s32 2, %v76
      %v78 = vrot.slane %v65, %v77
      %v79 = vlaneseq
      %v80 = vshrl.u32 %v79, 7
      %v81 = vsub.s32 3, %v80
      %v82 = vrot.slane %v65, %v81
      %87 = vst [vmem:[#allocation2] sm:$0xff] %v70
      %88 = vst [vmem:[#allocation2 + $0x8] sm:$0xff] %v74
      %89 = vst [vmem:[#allocation2 + $0x10] sm:$0xff] %v78
      %90 = vst [vmem:[#allocation2 + $0x18] sm:$0xff] %v82
    $region37: #{tpu_custom_call.1} parent=1 // pred_fallthru
      _
    %v91 = vld [vmem:[#allocation2] sm:$0xff]
    %v92 = vld [vmem:[#allocation2 + $0x8] sm:$0xff]
    %v93 = vld [vmem:[#allocation2 + $0x10] sm:$0xff]
    %v94 = vld [vmem:[#allocation2 + $0x18] sm:$0xff]
    %v95 = vld [vmem:[#allocation3] sm:$0xff]
    %v96 = vld [vmem:[#allocation3 + $0x8] sm:$0xff]
    %v97 = vpack.c.bf16 %v95, %v95
    %v98 = vpack.c.bf16 %v96, %v96
    %v99 = vld [vmem:[#allocation6] sm:$0xff]
    %v100 = vld [vmem:[#allocation6 + $0x8] sm:$0xff]
    %v101 = vld [vmem:[#allocation6 + $0x10] sm:$0xff]
    %v102 = vld [vmem:[#allocation6 + $0x18] sm:$0xff]
    %v103 = vld [vmem:[#allocation6 + $0x20] sm:$0xff]
    %v104 = vld [vmem:[#allocation6 + $0x28] sm:$0xff]
    %v105 = vld [vmem:[#allocation6 + $0x30] sm:$0xff]
    %v106 = vld [vmem:[#allocation6 + $0x38] sm:$0xff]
    %v107 = vld [vmem:[#allocation6 + $0x40] sm:$0xff]
    %v108 = vld [vmem:[#allocation6 + $0x48] sm:$0xff]
    %v109 = vld [vmem:[#allocation6 + $0x50] sm:$0xff]
    %v110 = vld [vmem:[#allocation6 + $0x58] sm:$0xff]
    %v111 = vld [vmem:[#allocation6 + $0x60] sm:$0xff]
    %v112 = vld [vmem:[#allocation6 + $0x68] sm:$0xff]
    %v113 = vld [vmem:[#allocation6 + $0x70] sm:$0xff]
    %v114 = vld [vmem:[#allocation6 + $0x78] sm:$0xff]
    %v115 = vld [vmem:[#allocation6 + $0x80] sm:$0xff]
    %v116 = vld [vmem:[#allocation6 + $0x88] sm:$0xff]
    %v117 = vld [vmem:[#allocation6 + $0x90] sm:$0xff]
    %v118 = vld [vmem:[#allocation6 + $0x98] sm:$0xff]
    %v119 = vld [vmem:[#allocation6 + $0xa0] sm:$0xff]
    %v120 = vld [vmem:[#allocation6 + $0xa8] sm:$0xff]
    %v121 = vld [vmem:[#allocation6 + $0xb0] sm:$0xff]
    %v122 = vld [vmem:[#allocation6 + $0xb8] sm:$0xff]
    %v123 = vld [vmem:[#allocation6 + $0xc0] sm:$0xff]
    %v124 = vld [vmem:[#allocation6 + $0xc8] sm:$0xff]
    %v125 = vld [vmem:[#allocation6 + $0xd0] sm:$0xff]
    %v126 = vld [vmem:[#allocation6 + $0xd8] sm:$0xff]
    %v127 = vld [vmem:[#allocation6 + $0xe0] sm:$0xff]
    %v128 = vld [vmem:[#allocation6 + $0xe8] sm:$0xff]
    %v129 = vld [vmem:[#allocation6 + $0xf0] sm:$0xff]
    %v130 = vld [vmem:[#allocation6 + $0xf8] sm:$0xff]
    %v131 = vld [vmem:[#allocation6 + $0x100] sm:$0xff]
    %v132 = vld [vmem:[#allocation6 + $0x108] sm:$0xff]
    %v133 = vld [vmem:[#allocation6 + $0x110] sm:$0xff]
    %v134 = vld [vmem:[#allocation6 + $0x118] sm:$0xff]
    %v135 = vld [vmem:[#allocation6 + $0x120] sm:$0xff]
    %v136 = vld [vmem:[#allocation6 + $0x128] sm:$0xff]
    %v137 = vld [vmem:[#allocation6 + $0x130] sm:$0xff]
    %v138 = vld [vmem:[#allocation6 + $0x138] sm:$0xff]
    %v139 = vld [vmem:[#allocation6 + $0x140] sm:$0xff]
    %v140 = vld [vmem:[#allocation6 + $0x148] sm:$0xff]
    %v141 = vld [vmem:[#allocation6 + $0x150] sm:$0xff]
    %v142 = vld [vmem:[#allocation6 + $0x158] sm:$0xff]
    %v143 = vld [vmem:[#allocation6 + $0x160] sm:$0xff]
    %v144 = vld [vmem:[#allocation6 + $0x168] sm:$0xff]
    %v145 = vld [vmem:[#allocation6 + $0x170] sm:$0xff]
    %v146 = vld [vmem:[#allocation6 + $0x178] sm:$0xff]
    %v147 = vld [vmem:[#allocation6 + $0x180] sm:$0xff]
    %v148 = vld [vmem:[#allocation6 + $0x188] sm:$0xff]
    %v149 = vld [vmem:[#allocation6 + $0x190] sm:$0xff]
    %v150 = vld [vmem:[#allocation6 + $0x198] sm:$0xff]
    %v151 = vld [vmem:[#allocation6 + $0x1a0] sm:$0xff]
    %v152 = vld [vmem:[#allocation6 + $0x1a8] sm:$0xff]
    %v153 = vld [vmem:[#allocation6 + $0x1b0] sm:$0xff]
    %v154 = vld [vmem:[#allocation6 + $0x1b8] sm:$0xff]
    %v155 = vld [vmem:[#allocation6 + $0x1c0] sm:$0xff]
    %v156 = vld [vmem:[#allocation6 + $0x1c8] sm:$0xff]
    %v157 = vld [vmem:[#allocation6 + $0x1d0] sm:$0xff]
    %v158 = vld [vmem:[#allocation6 + $0x1d8] sm:$0xff]
    %v159 = vld [vmem:[#allocation6 + $0x1e0] sm:$0xff]
    %v160 = vld [vmem:[#allocation6 + $0x1e8] sm:$0xff]
    %v161 = vld [vmem:[#allocation6 + $0x1f0] sm:$0xff]
    %v162 = vld [vmem:[#allocation6 + $0x1f8] sm:$0xff]
    %v227 = vunpack.c.l.b16 %v99
    %v228 = vunpack.c.h.b16 %v99
    %v229 = vunpack.c.l.b16 %v100
    %v230 = vunpack.c.h.b16 %v100
    %v231 = vunpack.c.l.b16 %v101
    %v232 = vunpack.c.h.b16 %v101
    %v233 = vunpack.c.l.b16 %v102
    %v234 = vunpack.c.h.b16 %v102
    %v235 = vunpack.c.l.b16 %v103
    %v236 = vunpack.c.h.b16 %v103
    %v237 = vunpack.c.l.b16 %v104
    %v238 = vunpack.c.h.b16 %v104
    %v239 = vunpack.c.l.b16 %v105
    %v240 = vunpack.c.h.b16 %v105
    %v241 = vunpack.c.l.b16 %v106
    %v242 = vunpack.c.h.b16 %v106
    %v243 = vunpack.c.l.b16 %v107
    %v244 = vunpack.c.h.b16 %v107
    %v245 = vunpack.c.l.b16 %v108
    %v246 = vunpack.c.h.b16 %v108
    %v247 = vunpack.c.l.b16 %v109
    %v248 = vunpack.c.h.b16 %v109
    %v249 = vunpack.c.l.b16 %v110
    %v250 = vunpack.c.h.b16 %v110
    %v251 = vunpack.c.l.b16 %v111
    %v252 = vunpack.c.h.b16 %v111
    %v253 = vunpack.c.l.b16 %v112
    %v254 = vunpack.c.h.b16 %v112
    %v255 = vunpack.c.l.b16 %v113
    %v256 = vunpack.c.h.b16 %v113
    %v257 = vunpack.c.l.b16 %v114
    %v258 = vunpack.c.h.b16 %v114
    %v259 = vunpack.c.l.b16 %v115
    %v260 = vunpack.c.h.b16 %v115
    %v261 = vunpack.c.l.b16 %v116
    %v262 = vunpack.c.h.b16 %v116
    %v263 = vunpack.c.l.b16 %v117
    %v264 = vunpack.c.h.b16 %v117
    %v265 = vunpack.c.l.b16 %v118
    %v266 = vunpack.c.h.b16 %v118
    %v267 = vunpack.c.l.b16 %v119
    %v268 = vunpack.c.h.b16 %v119
    %v269 = vunpack.c.l.b16 %v120
    %v270 = vunpack.c.h.b16 %v120
    %v271 = vunpack.c.l.b16 %v121
    %v272 = vunpack.c.h.b16 %v121
    %v273 = vunpack.c.l.b16 %v122
    %v274 = vunpack.c.h.b16 %v122
    %v275 = vunpack.c.l.b16 %v123
    %v276 = vunpack.c.h.b16 %v123
    %v277 = vunpack.c.l.b16 %v124
    %v278 = vunpack.c.h.b16 %v124
    %v279 = vunpack.c.l.b16 %v125
    %v280 = vunpack.c.h.b16 %v125
    %v281 = vunpack.c.l.b16 %v126
    %v282 = vunpack.c.h.b16 %v126
    %v283 = vunpack.c.l.b16 %v127
    %v284 = vunpack.c.h.b16 %v127
    %v285 = vunpack.c.l.b16 %v128
    %v286 = vunpack.c.h.b16 %v128
    %v287 = vunpack.c.l.b16 %v129
    %v288 = vunpack.c.h.b16 %v129
    %v289 = vunpack.c.l.b16 %v130
    %v290 = vunpack.c.h.b16 %v130
    %v291 = vunpack.c.l.b16 %v131
    %v292 = vunpack.c.h.b16 %v131
    %v293 = vunpack.c.l.b16 %v132
    %v294 = vunpack.c.h.b16 %v132
    %v295 = vunpack.c.l.b16 %v133
    %v296 = vunpack.c.h.b16 %v133
    %v297 = vunpack.c.l.b16 %v134
    %v298 = vunpack.c.h.b16 %v134
    %v299 = vunpack.c.l.b16 %v135
    %v300 = vunpack.c.h.b16 %v135
    %v301 = vunpack.c.l.b16 %v136
    %v302 = vunpack.c.h.b16 %v136
    %v303 = vunpack.c.l.b16 %v137
    %v304 = vunpack.c.h.b16 %v137
    %v305 = vunpack.c.l.b16 %v138
    %v306 = vunpack.c.h.b16 %v138
    %v307 = vunpack.c.l.b16 %v139
    %v308 = vunpack.c.h.b16 %v139
    %v309 = vunpack.c.l.b16 %v140
    %v310 = vunpack.c.h.b16 %v140
    %v311 = vunpack.c.l.b16 %v141
    %v312 = vunpack.c.h.b16 %v141
    %v313 = vunpack.c.l.b16 %v142
    %v314 = vunpack.c.h.b16 %v142
    %v315 = vunpack.c.l.b16 %v143
    %v316 = vunpack.c.h.b16 %v143
    %v317 = vunpack.c.l.b16 %v144
    %v318 = vunpack.c.h.b16 %v144
    %v319 = vunpack.c.l.b16 %v145
    %v320 = vunpack.c.h.b16 %v145
    %v321 = vunpack.c.l.b16 %v146
    %v322 = vunpack.c.h.b16 %v146
    %v323 = vunpack.c.l.b16 %v147
    %v324 = vunpack.c.h.b16 %v147
    %v325 = vunpack.c.l.b16 %v148
    %v326 = vunpack.c.h.b16 %v148
    %v327 = vunpack.c.l.b16 %v149
    %v328 = vunpack.c.h.b16 %v149
    %v329 = vunpack.c.l.b16 %v150
    %v330 = vunpack.c.h.b16 %v150
    %v331 = vunpack.c.l.b16 %v151
    %v332 = vunpack.c.h.b16 %v151
    %v333 = vunpack.c.l.b16 %v152
    %v334 = vunpack.c.h.b16 %v152
    %v335 = vunpack.c.l.b16 %v153
    %v336 = vunpack.c.h.b16 %v153
    %v337 = vunpack.c.l.b16 %v154
    %v338 = vunpack.c.h.b16 %v154
    %v339 = vunpack.c.l.b16 %v155
    %v340 = vunpack.c.h.b16 %v155
    %v341 = vunpack.c.l.b16 %v156
    %v342 = vunpack.c.h.b16 %v156
    %v343 = vunpack.c.l.b16 %v157
    %v344 = vunpack.c.h.b16 %v157
    %v345 = vunpack.c.l.b16 %v158
    %v346 = vunpack.c.h.b16 %v158
    %v347 = vunpack.c.l.b16 %v159
    %v348 = vunpack.c.h.b16 %v159
    %v349 = vunpack.c.l.b16 %v160
    %v350 = vunpack.c.h.b16 %v160
    %v351 = vunpack.c.l.b16 %v161
    %v352 = vunpack.c.h.b16 %v161
    %v353 = vunpack.c.l.b16 %v162
    %v354 = vunpack.c.h.b16 %v162
    %v355 = vpack.c.b16 %v231, %v227
    %v356 = vpack.c.b16 %v232, %v228
    %v357 = vpack.c.b16 %v233, %v229
    %v358 = vpack.c.b16 %v234, %v230
    %v359 = vpack.c.b16 %v239, %v235
    %v360 = vpack.c.b16 %v240, %v236
    %v361 = vpack.c.b16 %v241, %v237
    %v362 = vpack.c.b16 %v242, %v238
    %v363 = vpack.c.b16 %v247, %v243
    %v364 = vpack.c.b16 %v248, %v244
    %v365 = vpack.c.b16 %v249, %v245
    %v366 = vpack.c.b16 %v250, %v246
    %v367 = vpack.c.b16 %v255, %v251
    %v368 = vpack.c.b16 %v256, %v252
    %v369 = vpack.c.b16 %v257, %v253
    %v370 = vpack.c.b16 %v258, %v254
    %v371 = vpack.c.b16 %v263, %v259
    %v372 = vpack.c.b16 %v264, %v260
    %v373 = vpack.c.b16 %v265, %v261
    %v374 = vpack.c.b16 %v266, %v262
    %v375 = vpack.c.b16 %v271, %v267
    %v376 = vpack.c.b16 %v272, %v268
    %v377 = vpack.c.b16 %v273, %v269
    %v378 = vpack.c.b16 %v274, %v270
    %v379 = vpack.c.b16 %v279, %v275
    %v380 = vpack.c.b16 %v280, %v276
    %v381 = vpack.c.b16 %v281, %v277
    %v382 = vpack.c.b16 %v282, %v278
    %v383 = vpack.c.b16 %v287, %v283
    %v384 = vpack.c.b16 %v288, %v284
    %v385 = vpack.c.b16 %v289, %v285
    %v386 = vpack.c.b16 %v290, %v286
    %v387 = vpack.c.b16 %v295, %v291
    %v388 = vpack.c.b16 %v296, %v292
    %v389 = vpack.c.b16 %v297, %v293
    %v390 = vpack.c.b16 %v298, %v294
    %v391 = vpack.c.b16 %v303, %v299
    %v392 = vpack.c.b16 %v304, %v300
    %v393 = vpack.c.b16 %v305, %v301
    %v394 = vpack.c.b16 %v306, %v302
    %v395 = vpack.c.b16 %v311, %v307
    %v396 = vpack.c.b16 %v312, %v308
    %v397 = vpack.c.b16 %v313, %v309
    %v398 = vpack.c.b16 %v314, %v310
    %v399 = vpack.c.b16 %v319, %v315
    %v400 = vpack.c.b16 %v320, %v316
    %v401 = vpack.c.b16 %v321, %v317
    %v402 = vpack.c.b16 %v322, %v318
    %v403 = vpack.c.b16 %v327, %v323
    %v404 = vpack.c.b16 %v328, %v324
    %v405 = vpack.c.b16 %v329, %v325
    %v406 = vpack.c.b16 %v330, %v326
    %v407 = vpack.c.b16 %v335, %v331
    %v408 = vpack.c.b16 %v336, %v332
    %v409 = vpack.c.b16 %v337, %v333
    %v410 = vpack.c.b16 %v338, %v334
    %v411 = vpack.c.b16 %v343, %v339
    %v412 = vpack.c.b16 %v344, %v340
    %v413 = vpack.c.b16 %v345, %v341
    %v414 = vpack.c.b16 %v346, %v342
    %v415 = vpack.c.b16 %v351, %v347
    %v416 = vpack.c.b16 %v352, %v348
    %v417 = vpack.c.b16 %v353, %v349
    %v418 = vpack.c.b16 %v354, %v350
    %483 = vmatprep.subr.bf16.mxu0 %v356
    %484 = vmatpush1.bf16.msra.mxu0 %v355
    %485 = vmatprep.subr.bf16.mxu0 %v360
    %486 = vmatpush1.bf16.msra.mxu0 %v359
    %487 = vmatprep.subr.bf16.mxu0 %v364
    %488 = vmatpush1.bf16.msra.mxu0 %v363
    %489 = vmatprep.subr.bf16.mxu0 %v368
    %490 = vmatpush1.bf16.msra.mxu0 %v367
    %491 = vmatprep.subr.bf16.mxu0 %v372
    %492 = vmatpush1.bf16.msra.mxu0 %v371
    %493 = vmatprep.subr.bf16.mxu0 %v376
    %494 = vmatpush1.bf16.msra.mxu0 %v375
    %495 = vmatprep.subr.bf16.mxu0 %v380
    %496 = vmatpush1.bf16.msra.mxu0 %v379
    %497 = vmatprep.subr.bf16.mxu0 %v384
    %498 = vmatpush1.bf16.msra.mxu0 %v383
    %499 = vmatprep.subr.bf16.mxu0 %v388
    %500 = vmatpush1.bf16.msra.mxu0 %v387
    %501 = vmatprep.subr.bf16.mxu0 %v392
    %502 = vmatpush1.bf16.msra.mxu0 %v391
    %503 = vmatprep.subr.bf16.mxu0 %v396
    %504 = vmatpush1.bf16.msra.mxu0 %v395
    %505 = vmatprep.subr.bf16.mxu0 %v400
    %506 = vmatpush1.bf16.msra.mxu0 %v399
    %507 = vmatprep.subr.bf16.mxu0 %v404
    %508 = vmatpush1.bf16.msra.mxu0 %v403
    %509 = vmatprep.subr.bf16.mxu0 %v408
    %510 = vmatpush1.bf16.msra.mxu0 %v407
    %511 = vmatprep.subr.bf16.mxu0 %v412
    %512 = vmatpush1.bf16.msra.mxu0 %v411
    %513 = vmatprep.subr.bf16.mxu0 %v416
    %514 = vmatpush1.bf16.msra.mxu0 %v415
    %515 = vmatprep.mubr.bf16.mxu0 %v98
    %516 = vmatmul.mubr.bf16.gmra.mrb[0].mxu0 %v97
    %v517 = vpop.f32.mrb[0].mxu0
    %v518 = vadd.f32 0.0, %v517
    %v519 = vpop.f32.mrb[0].mxu0
    %v520 = vadd.f32 0.0, %v519
    %v521 = vpop.f32.mrb[0].mxu0
    %v522 = vpop.f32.mrb[0].mxu0
    %523 = vdwg.mxu0
    %524 = vmatprep.subr.bf16.mxu0 %v358
    %525 = vmatpush1.bf16.msra.mxu0 %v357
    %526 = vmatprep.subr.bf16.mxu0 %v362
    %527 = vmatpush1.bf16.msra.mxu0 %v361
    %528 = vmatprep.subr.bf16.mxu0 %v366
    %529 = vmatpush1.bf16.msra.mxu0 %v365
    %530 = vmatprep.subr.bf16.mxu0 %v370
    %531 = vmatpush1.bf16.msra.mxu0 %v369
    %532 = vmatprep.subr.bf16.mxu0 %v374
    %533 = vmatpush1.bf16.msra.mxu0 %v373
    %534 = vmatprep.subr.bf16.mxu0 %v378
    %535 = vmatpush1.bf16.msra.mxu0 %v377
    %536 = vmatprep.subr.bf16.mxu0 %v382
    %537 = vmatpush1.bf16.msra.mxu0 %v381
    %538 = vmatprep.subr.bf16.mxu0 %v386
    %539 = vmatpush1.bf16.msra.mxu0 %v385
    %540 = vmatprep.subr.bf16.mxu0 %v390
    %541 = vmatpush1.bf16.msra.mxu0 %v389
    %542 = vmatprep.subr.bf16.mxu0 %v394
    %543 = vmatpush1.bf16.msra.mxu0 %v393
    %544 = vmatprep.subr.bf16.mxu0 %v398
    %545 = vmatpush1.bf16.msra.mxu0 %v397
    %546 = vmatprep.subr.bf16.mxu0 %v402
    %547 = vmatpush1.bf16.msra.mxu0 %v401
    %548 = vmatprep.subr.bf16.mxu0 %v406
    %549 = vmatpush1.bf16.msra.mxu0 %v405
    %550 = vmatprep.subr.bf16.mxu0 %v410
    %551 = vmatpush1.bf16.msra.mxu0 %v409
    %552 = vmatprep.subr.bf16.mxu0 %v414
    %553 = vmatpush1.bf16.msra.mxu0 %v413
    %554 = vmatprep.subr.bf16.mxu0 %v418
    %555 = vmatpush1.bf16.msra.mxu0 %v417
    %556 = vmatprep.mubr.bf16.mxu0 %v98
    %557 = vmatmul.mubr.bf16.gmra.mrb[0].mxu0 %v97
    %v558 = vpop.f32.mrb[0].mxu0
    %v559 = vadd.f32 0.0, %v558
    %v560 = vpop.f32.mrb[0].mxu0
    %v561 = vadd.f32 0.0, %v560
    %v562 = vpop.f32.mrb[0].mxu0
    %v563 = vpop.f32.mrb[0].mxu0
    %564 = vdwg.mxu0
    %v565 = vadd.f32 %v91, %v518
    %v566 = vadd.f32 %v92, %v520
    %v567 = vadd.f32 %v93, %v559
    %v568 = vadd.f32 %v94, %v561
    %569 = vst [vmem:[#allocation2] sm:$0xff] %v565
    %570 = vst [vmem:[#allocation2 + $0x8] sm:$0xff] %v566
    %571 = vst [vmem:[#allocation2 + $0x10] sm:$0xff] %v567
    %572 = vst [vmem:[#allocation2 + $0x18] sm:$0xff] %v568
    // Predicated region
    $region38: #{tpu_custom_call.1} parent=1 // pred_check
      %p573 = pneg %p61
    $region39: #{tpu_custom_call.1} parent=1 // pred_check_branch
      %575 = sbr.rel (%p573) target = $region41
    $region40: #{tpu_custom_call.1} parent=1 // pred_region
      %v576 = vld [vmem:[#allocation2] sm:$0xff]
      %v577 = vld [vmem:[#allocation2 + $0x8] sm:$0xff]
      %v578 = vld [vmem:[#allocation2 + $0x10] sm:$0xff]
      %v579 = vld [vmem:[#allocation2 + $0x18] sm:$0xff]
      %vm580 = vcmp.ge.f32.partialorder %v576, 0.0
      %vm581 = vcmp.ge.f32.partialorder %v577, 0.0
      %vm582 = vcmp.ge.f32.partialorder %v578, 0.0
      %vm583 = vcmp.ge.f32.partialorder %v579, 0.0
      %v584 = vmul.f32 %v576, 0.01
      %v585 = vmul.f32 %v577, 0.01
      %v586 = vmul.f32 %v578, 0.01
      %v587 = vmul.f32 %v579, 0.01
      %v588 = vsel %vm580, %v576, %v584
      %v589 = vsel %vm581, %v577, %v585
      %v590 = vsel %vm582, %v578, %v586
      %v591 = vsel %vm583, %v579, %v587
      %v592 = vpack.c.bf16 %v588, %v588
      %v593 = vpack.c.bf16 %v589, %v589
      %v594 = vpack.c.bf16 %v590, %v590
      %v595 = vpack.c.bf16 %v591, %v591
      %v596 = vld [vmem:[#allocation8] sm:$0xf]
      %v597 = vld [vmem:[#allocation8 + $0x4] sm:$0xf]
      %v598 = vld [vmem:[#allocation8 + $0x8] sm:$0xf]
      %v599 = vld [vmem:[#allocation8 + $0xc] sm:$0xf]
      %v600 = vld [vmem:[#allocation8 + $0x10] sm:$0xf]
      %v601 = vld [vmem:[#allocation8 + $0x14] sm:$0xf]
      %v602 = vld [vmem:[#allocation8 + $0x18] sm:$0xf]
      %v603 = vld [vmem:[#allocation8 + $0x1c] sm:$0xf]
      %v604 = vld [vmem:[#allocation8 + $0x20] sm:$0xf]
      %v605 = vld [vmem:[#allocation8 + $0x24] sm:$0xf]
      %v606 = vld [vmem:[#allocation8 + $0x28] sm:$0xf]
      %v607 = vld [vmem:[#allocation8 + $0x2c] sm:$0xf]
      %v608 = vld [vmem:[#allocation8 + $0x30] sm:$0xf]
      %v609 = vld [vmem:[#allocation8 + $0x34] sm:$0xf]
      %v610 = vld [vmem:[#allocation8 + $0x38] sm:$0xf]
      %v611 = vld [vmem:[#allocation8 + $0x3c] sm:$0xf]
      %v612 = vld [vmem:[#allocation8 + $0x40] sm:$0xf]
      %v613 = vld [vmem:[#allocation8 + $0x44] sm:$0xf]
      %v614 = vld [vmem:[#allocation8 + $0x48] sm:$0xf]
      %v615 = vld [vmem:[#allocation8 + $0x4c] sm:$0xf]
      %v616 = vld [vmem:[#allocation8 + $0x50] sm:$0xf]
      %v617 = vld [vmem:[#allocation8 + $0x54] sm:$0xf]
      %v618 = vld [vmem:[#allocation8 + $0x58] sm:$0xf]
      %v619 = vld [vmem:[#allocation8 + $0x5c] sm:$0xf]
      %v620 = vld [vmem:[#allocation8 + $0x60] sm:$0xf]
      %v621 = vld [vmem:[#allocation8 + $0x64] sm:$0xf]
      %v622 = vld [vmem:[#allocation8 + $0x68] sm:$0xf]
      %v623 = vld [vmem:[#allocation8 + $0x6c] sm:$0xf]
      %v624 = vld [vmem:[#allocation8 + $0x70] sm:$0xf]
      %v625 = vld [vmem:[#allocation8 + $0x74] sm:$0xf]
      %v626 = vld [vmem:[#allocation8 + $0x78] sm:$0xf]
      %v627 = vld [vmem:[#allocation8 + $0x7c] sm:$0xf]
      %v628 = vld [vmem:[#allocation8 + $0x80] sm:$0xf]
      %v629 = vld [vmem:[#allocation8 + $0x84] sm:$0xf]
      %v630 = vld [vmem:[#allocation8 + $0x88] sm:$0xf]
      %v631 = vld [vmem:[#allocation8 + $0x8c] sm:$0xf]
      %v632 = vld [vmem:[#allocation8 + $0x90] sm:$0xf]
      %v633 = vld [vmem:[#allocation8 + $0x94] sm:$0xf]
      %v634 = vld [vmem:[#allocation8 + $0x98] sm:$0xf]
      %v635 = vld [vmem:[#allocation8 + $0x9c] sm:$0xf]
      %v636 = vld [vmem:[#allocation8 + $0xa0] sm:$0xf]
      %v637 = vld [vmem:[#allocation8 + $0xa4] sm:$0xf]
      %v638 = vld [vmem:[#allocation8 + $0xa8] sm:$0xf]
      %v639 = vld [vmem:[#allocation8 + $0xac] sm:$0xf]
      %v640 = vld [vmem:[#allocation8 + $0xb0] sm:$0xf]
      %v641 = vld [vmem:[#allocation8 + $0xb4] sm:$0xf]
      %v642 = vld [vmem:[#allocation8 + $0xb8] sm:$0xf]
      %v643 = vld [vmem:[#allocation8 + $0xbc] sm:$0xf]
      %v644 = vld [vmem:[#allocation8 + $0xc0] sm:$0xf]
      %v645 = vld [vmem:[#allocation8 + $0xc4] sm:$0xf]
      %v646 = vld [vmem:[#allocation8 + $0xc8] sm:$0xf]
      %v647 = vld [vmem:[#allocation8 + $0xcc] sm:$0xf]
      %v648 = vld [vmem:[#allocation8 + $0xd0] sm:$0xf]
      %v649 = vld [vmem:[#allocation8 + $0xd4] sm:$0xf]
      %v650 = vld [vmem:[#allocation8 + $0xd8] sm:$0xf]
      %v651 = vld [vmem:[#allocation8 + $0xdc] sm:$0xf]
      %v652 = vld [vmem:[#allocation8 + $0xe0] sm:$0xf]
      %v653 = vld [vmem:[#allocation8 + $0xe4] sm:$0xf]
      %v654 = vld [vmem:[#allocation8 + $0xe8] sm:$0xf]
      %v655 = vld [vmem:[#allocation8 + $0xec] sm:$0xf]
      %v656 = vld [vmem:[#allocation8 + $0xf0] sm:$0xf]
      %v657 = vld [vmem:[#allocation8 + $0xf4] sm:$0xf]
      %v658 = vld [vmem:[#allocation8 + $0xf8] sm:$0xf]
      %v659 = vld [vmem:[#allocation8 + $0xfc] sm:$0xf]
      %v660 = vld [vmem:[%s4] sm:$0x1]
      %v662 = vlaneseq
      %v663 = vshrl.u32 %v662, 7
      %v664 = vsub.s32 0, %v663
      %v665 = vrot.slane %v660, %v664
      %v731 = vunpack.c.l.b16 %v596
      %v732 = vunpack.c.l.b16 %v597
      %v733 = vunpack.c.l.b16 %v598
      %v734 = vunpack.c.l.b16 %v599
      %v735 = vunpack.c.l.b16 %v600
      %v736 = vunpack.c.l.b16 %v601
      %v737 = vunpack.c.l.b16 %v602
      %v738 = vunpack.c.l.b16 %v603
      %v739 = vunpack.c.l.b16 %v604
      %v740 = vunpack.c.l.b16 %v605
      %v741 = vunpack.c.l.b16 %v606
      %v742 = vunpack.c.l.b16 %v607
      %v743 = vunpack.c.l.b16 %v608
      %v744 = vunpack.c.l.b16 %v609
      %v745 = vunpack.c.l.b16 %v610
      %v746 = vunpack.c.l.b16 %v611
      %v747 = vunpack.c.l.b16 %v612
      %v748 = vunpack.c.l.b16 %v613
      %v749 = vunpack.c.l.b16 %v614
      %v750 = vunpack.c.l.b16 %v615
      %v751 = vunpack.c.l.b16 %v616
      %v752 = vunpack.c.l.b16 %v617
      %v753 = vunpack.c.l.b16 %v618
      %v754 = vunpack.c.l.b16 %v619
      %v755 = vunpack.c.l.b16 %v620
      %v756 = vunpack.c.l.b16 %v621
      %v757 = vunpack.c.l.b16 %v622
      %v758 = vunpack.c.l.b16 %v623
      %v759 = vunpack.c.l.b16 %v624
      %v760 = vunpack.c.l.b16 %v625
      %v761 = vunpack.c.l.b16 %v626
      %v762 = vunpack.c.l.b16 %v627
      %v763 = vunpack.c.l.b16 %v628
      %v764 = vunpack.c.l.b16 %v629
      %v765 = vunpack.c.l.b16 %v630
      %v766 = vunpack.c.l.b16 %v631
      %v767 = vunpack.c.l.b16 %v632
      %v768 = vunpack.c.l.b16 %v633
      %v769 = vunpack.c.l.b16 %v634
      %v770 = vunpack.c.l.b16 %v635
      %v771 = vunpack.c.l.b16 %v636
      %v772 = vunpack.c.l.b16 %v637
      %v773 = vunpack.c.l.b16 %v638
      %v774 = vunpack.c.l.b16 %v639
      %v775 = vunpack.c.l.b16 %v640
      %v776 = vunpack.c.l.b16 %v641
      %v777 = vunpack.c.l.b16 %v642
      %v778 = vunpack.c.l.b16 %v643
      %v779 = vunpack.c.l.b16 %v644
      %v780 = vunpack.c.l.b16 %v645
      %v781 = vunpack.c.l.b16 %v646
      %v782 = vunpack.c.l.b16 %v647
      %v783 = vunpack.c.l.b16 %v648
      %v784 = vunpack.c.l.b16 %v649
      %v785 = vunpack.c.l.b16 %v650
      %v786 = vunpack.c.l.b16 %v651
      %v787 = vunpack.c.l.b16 %v652
      %v788 = vunpack.c.l.b16 %v653
      %v789 = vunpack.c.l.b16 %v654
      %v790 = vunpack.c.l.b16 %v655
      %v791 = vunpack.c.l.b16 %v656
      %v792 = vunpack.c.l.b16 %v657
      %v793 = vunpack.c.l.b16 %v658
      %v794 = vunpack.c.l.b16 %v659
      %v795 = vpack.c.b16 %v732, %v731
      %v796 = vpack.c.b16 %v734, %v733
      %v797 = vpack.c.b16 %v736, %v735
      %v798 = vpack.c.b16 %v738, %v737
      %v799 = vpack.c.b16 %v740, %v739
      %v800 = vpack.c.b16 %v742, %v741
      %v801 = vpack.c.b16 %v744, %v743
      %v802 = vpack.c.b16 %v746, %v745
      %v803 = vpack.c.b16 %v748, %v747
      %v804 = vpack.c.b16 %v750, %v749
      %v805 = vpack.c.b16 %v752, %v751
      %v806 = vpack.c.b16 %v754, %v753
      %v807 = vpack.c.b16 %v756, %v755
      %v808 = vpack.c.b16 %v758, %v757
      %v809 = vpack.c.b16 %v760, %v759
      %v810 = vpack.c.b16 %v762, %v761
      %v811 = vpack.c.b16 %v764, %v763
      %v812 = vpack.c.b16 %v766, %v765
      %v813 = vpack.c.b16 %v768, %v767
      %v814 = vpack.c.b16 %v770, %v769
      %v815 = vpack.c.b16 %v772, %v771
      %v816 = vpack.c.b16 %v774, %v773
      %v817 = vpack.c.b16 %v776, %v775
      %v818 = vpack.c.b16 %v778, %v777
      %v819 = vpack.c.b16 %v780, %v779
      %v820 = vpack.c.b16 %v782, %v781
      %v821 = vpack.c.b16 %v784, %v783
      %v822 = vpack.c.b16 %v786, %v785
      %v823 = vpack.c.b16 %v788, %v787
      %v824 = vpack.c.b16 %v790, %v789
      %v825 = vpack.c.b16 %v792, %v791
      %v826 = vpack.c.b16 %v794, %v793
      %859 = vmatprep.subr.bf16.mxu0 0
      %860 = vmatpush1.bf16.msra.mxu0 %v795
      %861 = vmatprep.subr.bf16.mxu0 0
      %862 = vmatpush1.bf16.msra.mxu0 %v796
      %863 = vmatprep.subr.bf16.mxu0 0
      %864 = vmatpush1.bf16.msra.mxu0 %v797
      %865 = vmatprep.subr.bf16.mxu0 0
      %866 = vmatpush1.bf16.msra.mxu0 %v798
      %867 = vmatprep.subr.bf16.mxu0 0
      %868 = vmatpush1.bf16.msra.mxu0 %v799
      %869 = vmatprep.subr.bf16.mxu0 0
      %870 = vmatpush1.bf16.msra.mxu0 %v800
      %871 = vmatprep.subr.bf16.mxu0 0
      %872 = vmatpush1.bf16.msra.mxu0 %v801
      %873 = vmatprep.subr.bf16.mxu0 0
      %874 = vmatpush1.bf16.msra.mxu0 %v802
      %875 = vmatprep.subr.bf16.mxu0 0
      %876 = vmatpush1.bf16.msra.mxu0 %v803
      %877 = vmatprep.subr.bf16.mxu0 0
      %878 = vmatpush1.bf16.msra.mxu0 %v804
      %879 = vmatprep.subr.bf16.mxu0 0
      %880 = vmatpush1.bf16.msra.mxu0 %v805
      %881 = vmatprep.subr.bf16.mxu0 0
      %882 = vmatpush1.bf16.msra.mxu0 %v806
      %883 = vmatprep.subr.bf16.mxu0 0
      %884 = vmatpush1.bf16.msra.mxu0 %v807
      %885 = vmatprep.subr.bf16.mxu0 0
      %886 = vmatpush1.bf16.msra.mxu0 %v808
      %887 = vmatprep.subr.bf16.mxu0 0
      %888 = vmatpush1.bf16.msra.mxu0 %v809
      %889 = vmatprep.subr.bf16.mxu0 0
      %890 = vmatpush1.bf16.msra.mxu0 %v810
      %891 = vmatprep.mubr.bf16.mxu0 %v593
      %892 = vmatmul.mubr.bf16.gmra.mrb[0].mxu0 %v592
      %v893 = vpop.f32.mrb[0].mxu0
      %v894 = vadd.f32 %v665, %v893
      %v895 = vpop.f32.mrb[0].mxu0
      %v896 = vpop.f32.mrb[0].mxu0
      %v897 = vpop.f32.mrb[0].mxu0
      %898 = vdwg.mxu0
      %899 = vmatprep.subr.bf16.mxu0 0
      %900 = vmatpush1.bf16.msra.mxu0 %v811
      %901 = vmatprep.subr.bf16.mxu0 0
      %902 = vmatpush1.bf16.msra.mxu0 %v812
      %903 = vmatprep.subr.bf16.mxu0 0
      %904 = vmatpush1.bf16.msra.mxu0 %v813
      %905 = vmatprep.subr.bf16.mxu0 0
      %906 = vmatpush1.bf16.msra.mxu0 %v814
      %907 = vmatprep.subr.bf16.mxu0 0
      %908 = vmatpush1.bf16.msra.mxu0 %v815
      %909 = vmatprep.subr.bf16.mxu0 0
      %910 = vmatpush1.bf16.msra.mxu0 %v816
      %911 = vmatprep.subr.bf16.mxu0 0
      %912 = vmatpush1.bf16.msra.mxu0 %v817
      %913 = vmatprep.subr.bf16.mxu0 0
      %914 = vmatpush1.bf16.msra.mxu0 %v818
      %915 = vmatprep.subr.bf16.mxu0 0
      %916 = vmatpush1.bf16.msra.mxu0 %v819
      %917 = vmatprep.subr.bf16.mxu0 0
      %918 = vmatpush1.bf16.msra.mxu0 %v820
      %919 = vmatprep.subr.bf16.mxu0 0
      %920 = vmatpush1.bf16.msra.mxu0 %v821
      %921 = vmatprep.subr.bf16.mxu0 0
      %922 = vmatpush1.bf16.msra.mxu0 %v822
      %923 = vmatprep.subr.bf16.mxu0 0
      %924 = vmatpush1.bf16.msra.mxu0 %v823
      %925 = vmatprep.subr.bf16.mxu0 0
      %926 = vmatpush1.bf16.msra.mxu0 %v824
      %927 = vmatprep.subr.bf16.mxu0 0
      %928 = vmatpush1.bf16.msra.mxu0 %v825
      %929 = vmatprep.subr.bf16.mxu0 0
      %930 = vmatpush1.bf16.msra.mxu0 %v826
      %931 = vmatprep.mubr.bf16.mxu0 %v595
      %932 = vmatmul.mubr.bf16.gmra.mrb[0].mxu0 %v594
      %v933 = vpop.f32.mrb[0].mxu0
      %v934 = vadd.f32 %v894, %v933
      %v935 = vpop.f32.mrb[0].mxu0
      %v936 = vpop.f32.mrb[0].mxu0
      %v937 = vpop.f32.mrb[0].mxu0
      %938 = vdwg.mxu0
      %939 = vst [vmem:[#allocation9] sm:$0xff] %v934
    $region41: #{tpu_custom_call.1} parent=1 // pred_fallthru
      _
    // Predicated region
    $region42: #{tpu_custom_call.1} parent=1 // pred_check
      _
    $region43: #{tpu_custom_call.1} parent=1 // pred_check_branch
      %941 = sbr.rel (0) target = $region45
    $region44: #{tpu_custom_call.1} parent=1 // pred_region
      %s943 = ssub.s32 128, 128
      %944 = vsyncadd [#allocation5], %s943
      %s946 = sshll.u32 [#allocation9], 4
      %s947 = int_to_ptr.vmem [resolvable:$true] %s946
      %949 = dma.vmem_to_hbm [thread:$0]  %s947, 128, %s5, [#allocation5]
    $region45: #{tpu_custom_call.1} parent=1 // pred_fallthru
      _
    // Predicated region
    $region46: #{tpu_custom_call.1} parent=1 // pred_check
      _
    $region47: #{tpu_custom_call.1} parent=1 // pred_check_branch
      %951 = sbr.rel (0) target = $region49
    $region48: #{tpu_custom_call.1} parent=1 // pred_region
      %952 = dma.done [#allocation5], 128
    $region49: #{tpu_custom_call.1} parent=1 // pred_fallthru
      _
    %953 = vsyncpa [#allocation4], 1
    %954 = vsyncpa [#allocation7], 1
    %955 = vsyncpa [#allocation5], 1

</llo_original>
